<compile_context>
chip_gen: v5e
topology: v5e:2x2
jax: 0.10.0
libtpu: 0.0.40
codegen_flags: <defaults>
</compile_context>

<pallas_src>
import functools

import jax
import jax.numpy as jnp
from jax.experimental import pallas as pl
from jax.experimental.pallas import tpu as pltpu

_LANE = 128
_SUBLANE = 8


def _tpu_config():
    """Returns (num_tensorcores, max_block_rows, vmem_limit_bytes) for the local chip."""
    try:
        kind = jax.devices()[0].device_kind.lower()
    except Exception:
        kind = ""
    if "v7" in kind or "tpu7" in kind:
        # 2 TensorCores, 64 MiB physical VMEM -> big (but not maximal) tiles,
        # leave headroom for compiler internal scratch.
        return 2, 8192, 48 << 20
    if any(v in kind for v in ("v6", "v5", "v4")):
        # Single exposed TensorCore, 128 MiB physical VMEM.
        return 1, 8192, 64 << 20
    # Unknown chip: stay within the default scoped-VMEM budget.
    return 1, 2048, None


def _iou_kernel(x_ref, y_ref, inter_ref, total_ref, *,
                rows, block_rows, blocks_total, blocks_per_core,
                acc_rows, needs_tail_mask, has_dup_blocks):
    c = pl.program_id(0)          # core (parallel) axis
    j = pl.program_id(1)          # streaming reduction ("arbitrary") axis
    block = c * blocks_per_core + j

    @pl.when(j == 0)
    def _():
        inter_ref[...] = jnp.zeros_like(inter_ref)
        total_ref[...] = jnp.zeros_like(total_ref)

    def accumulate(masked):
        x = x_ref[...].astype(jnp.float32)
        y = y_ref[...].astype(jnp.float32)
        prod = x * y
        summ = x + y
        if masked:
            # Row-granular mask for the ragged final block; also kills any
            # garbage (NaN/Inf) in the out-of-bounds part of the DMA buffer.
            rid = jax.lax.broadcasted_iota(jnp.int32, (block_rows, _LANE), 0)
            valid = rid < (rows - block * block_rows)
            prod = jnp.where(valid, prod, 0.0)
            summ = jnp.where(valid, summ, 0.0)
        # Fold into the resident (acc_rows, 128) accumulator: acc_rows // 8
        # independent add chains expose ILP across the 4 VALU slots.
        groups = block_rows // acc_rows
        inter_ref[...] += prod.reshape(groups, acc_rows, _LANE).sum(axis=0)
        total_ref[...] += summ.reshape(groups, acc_rows, _LANE).sum(axis=0)

    last = blocks_total - 1
    if needs_tail_mask:
        # Steady-state blocks stay mask-free; only the final block pays for the
        # iota/compare/select. Clamped duplicate blocks (block > last) skip all
        # compute, so only their DMA is wasted.
        @pl.when(block < last)
        def _():
            accumulate(masked=False)

        @pl.when(block == last)
        def _():
            accumulate(masked=True)
    elif has_dup_blocks:
        @pl.when(block < blocks_total)
        def _():
            accumulate(masked=False)
    else:
        accumulate(masked=False)


def iou_loss(inputs, targets, smooth=1.0, *, block_rows_cap=None, num_cores=None):
    """1 - (sum(x*y)+smooth) / (sum(x+y) - sum(x*y) + smooth), like IoULoss.forward."""
    x = jnp.reshape(inputs, (-1,))   # free metadata reshape; native dtype kept
    y = jnp.reshape(targets, (-1,))
    n = x.shape[0]
    if n == 0:                        # degenerate: IoU = smooth/smooth = 1
        return jnp.float32(0.0)

    det_cores, det_cap, vmem_limit = _tpu_config()
    ncores = det_cores if num_cores is None else num_cores
    max_block_rows = det_cap if block_rows_cap is None else block_rows_cap

    # Lane padding only when n is not a multiple of 128 (zero padding is
    # sum-neutral). The common segmentation case skips it entirely.
    # TODO(synk): for ragged n this jnp.pad materializes a full HBM copy of both
    # operands; removing it needs 1-D element blocks + in-kernel reshape, which
    # requires Mosaic-side validation before switching the proven 2-D layout.
    padded = pl.cdiv(n, _LANE) * _LANE
    if padded != n:
        x = jnp.pad(x, (0, padded - n))
        y = jnp.pad(y, (0, padded - n))
    rows = padded // _LANE
    x2d = x.reshape(rows, _LANE)
    y2d = y.reshape(rows, _LANE)

    block_rows = min(max_block_rows, pl.cdiv(rows, _SUBLANE) * _SUBLANE)
    block_rows = max(_SUBLANE, (block_rows // _SUBLANE) * _SUBLANE)
    blocks_total = pl.cdiv(rows, block_rows)
    needs_tail_mask = (rows % block_rows) != 0

    ncores = max(1, min(ncores, blocks_total))
    blocks_per_core = pl.cdiv(blocks_total, ncores)
    has_dup_blocks = (ncores * blocks_per_core) != blocks_total

    # Up to 4 independent accumulator vregs (32 rows) when the block allows it.
    sub_blocks = block_rows // _SUBLANE
    acc_groups = 4 if sub_blocks % 4 == 0 else (2 if sub_blocks % 2 == 0 else 1)
    acc_rows = acc_groups * _SUBLANE

    if has_dup_blocks:
        def in_map(c, j):
            # Clamp so the DMA never walks past the array; duplicate blocks are
            # compute-skipped inside the kernel.
            return (jnp.minimum(c * blocks_per_core + j, blocks_total - 1), 0)
    else:
        def in_map(c, j):
            return (c * blocks_per_core + j, 0)

    def out_map(c, j):
        return (c, 0)

    kernel = functools.partial(
        _iou_kernel,
        rows=rows,
        block_rows=block_rows,
        blocks_total=blocks_total,
        blocks_per_core=blocks_per_core,
        acc_rows=acc_rows,
        needs_tail_mask=needs_tail_mask,
        has_dup_blocks=has_dup_blocks,
    )

    cp_kwargs = dict(dimension_semantics=("parallel", "arbitrary"))
    if vmem_limit is not None:
        cp_kwargs["vmem_limit_bytes"] = vmem_limit

    inter_p, total_p = pl.pallas_call(
        kernel,
        out_shape=(
            jax.ShapeDtypeStruct((ncores * acc_rows, _LANE), jnp.float32),
            jax.ShapeDtypeStruct((ncores * acc_rows, _LANE), jnp.float32),
        ),
        grid_spec=pltpu.PrefetchScalarGridSpec(
            num_scalar_prefetch=0,
            grid=(ncores, blocks_per_core),
            in_specs=[
                pl.BlockSpec((block_rows, _LANE), in_map),
                pl.BlockSpec((block_rows, _LANE), in_map),
            ],
            out_specs=[
                pl.BlockSpec((acc_rows, _LANE), out_map),
                pl.BlockSpec((acc_rows, _LANE), out_map),
            ],
        ),
        compiler_params=pltpu.CompilerParams(**cp_kwargs),
    )(x2d, y2d)

    # smooth is applied outside the kernel, in f32, exactly like the reference.
    intersection = jnp.sum(inter_p)
    total = jnp.sum(total_p)
    union = total - intersection
    iou = (intersection + jnp.float32(smooth)) / (union + jnp.float32(smooth))
    return jnp.float32(1.0) - iou


def iou_loss_ref(inputs, targets, smooth=1.0):
    x = jnp.reshape(inputs, (-1,)).astype(jnp.float32)
    y = jnp.reshape(targets, (-1,)).astype(jnp.float32)
    intersection = jnp.sum(x * y)
    total = jnp.sum(x + y)
    union = total - intersection
    return 1.0 - (intersection + smooth) / (union + smooth)


if __name__ == "__main__":
    key = jax.random.PRNGKey(0)

    def make(shape, k):
        k1, k2 = jax.random.split(k)
        xs = jax.nn.sigmoid(jax.random.normal(k1, shape, dtype=jnp.float32))
        ys = (jax.random.uniform(k2, shape) > 0.5).astype(jnp.float32)
        return xs, ys

    # The extra kwargs shrink the tiles so the multi-block / multi-core /
    # ragged-tail / duplicate-block code paths are exercised with small data.
    cases = [
        ((2, 4, 16, 16), {}),                                    # single exact block, fast path
        ((2, 3, 7, 11), {}),                                     # ragged single block (gated mask)
        ((2, 4, 16, 16), dict(block_rows_cap=8, num_cores=2)),   # 2 blocks, even 2-core split
        ((3, 4, 16, 16), dict(block_rows_cap=8, num_cores=2)),   # 3 blocks, duplicate-block skip
        ((5, 499), dict(block_rows_cap=8, num_cores=2)),         # ragged tail + duplicate block
    ]

    k = key
    for shape, kw in cases:
        k, sub = jax.random.split(k)
        xs, ys = make(shape, sub)
        got = jax.block_until_ready(iou_loss(xs, ys, smooth=1.0, **kw))
        want = jax.block_until_ready(iou_loss_ref(xs, ys, smooth=1.0))
        assert jnp.allclose(got, want, rtol=1e-5, atol=1e-5), (shape, kw, got, want)

    print("KERNEL_OK")
</pallas_src>

<mosaic_0001>
module attributes {stable_mosaic.version = 11 : i64} {
  func.func @_iou_kernel(%arg0: i32, %arg1: i32, %arg2: memref<16x128xf32, #tpu.memory_space<vmem>>, %arg3: memref<16x128xf32, #tpu.memory_space<vmem>>, %arg4: memref<16x128xf32, #tpu.memory_space<vmem>>, %arg5: memref<16x128xf32, #tpu.memory_space<vmem>>) attributes {dimension_semantics = [#tpu.dimension_semantics<parallel>, #tpu.dimension_semantics<arbitrary>], iteration_bounds = array<i64: 1, 1>, scalar_prefetch = 0 : i64, scratch_operands = 0 : i64, tpu.core_type = #tpu.core_type<tc>, window_params = [{transform_indices = @transform_0, window_bounds = array<i64: 16, 128>}, {transform_indices = @transform_1, window_bounds = array<i64: 16, 128>}, {transform_indices = @transform_2, window_bounds = array<i64: 16, 128>}, {transform_indices = @transform_3, window_bounds = array<i64: 16, 128>}]} {
    %c0_i32 = arith.constant 0 : i32
    %0 = arith.cmpi eq, %arg1, %c0_i32 : i32
    %1 = arith.extui %0 : i1 to i32
    %c0_i32_0 = arith.constant 0 : i32
    %2 = arith.cmpi ne, %1, %c0_i32_0 : i32
    scf.if %2 {
      %cst_13 = arith.constant 0.000000e+00 : f32
      %17 = vector.broadcast %cst_13 : f32 to vector<16x128xf32>
      %c0_14 = arith.constant 0 : index
      %c0_15 = arith.constant 0 : index
      %18 = vector.load %arg4[%c0_14, %c0_15] : memref<16x128xf32, #tpu.memory_space<vmem>>, vector<16x128xf32>
      tpu.vector_store %arg4[%c0_14, %c0_15], %17 {strides = array<i32>} : memref<16x128xf32, #tpu.memory_space<vmem>>, vector<16x128xf32>,
      %cst_16 = arith.constant 0.000000e+00 : f32
      %19 = vector.broadcast %cst_16 : f32 to vector<16x128xf32>
      %c0_17 = arith.constant 0 : index
      %c0_18 = arith.constant 0 : index
      %20 = vector.load %arg5[%c0_17, %c0_18] : memref<16x128xf32, #tpu.memory_space<vmem>>, vector<16x128xf32>
      tpu.vector_store %arg5[%c0_17, %c0_18], %19 {strides = array<i32>} : memref<16x128xf32, #tpu.memory_space<vmem>>, vector<16x128xf32>,
    } else {
    }
    %c0 = arith.constant 0 : index
    %c0_1 = arith.constant 0 : index
    %3 = vector.load %arg2[%c0, %c0_1] : memref<16x128xf32, #tpu.memory_space<vmem>>, vector<16x128xf32>
    %c0_2 = arith.constant 0 : index
    %c0_3 = arith.constant 0 : index
    %4 = vector.load %arg3[%c0_2, %c0_3] : memref<16x128xf32, #tpu.memory_space<vmem>>, vector<16x128xf32>
    %5 = arith.mulf %3, %4 : vector<16x128xf32>
    %6 = arith.addf %3, %4 : vector<16x128xf32>
    %c0_4 = arith.constant 0 : index
    %c0_5 = arith.constant 0 : index
    %7 = vector.load %arg4[%c0_4, %c0_5] : memref<16x128xf32, #tpu.memory_space<vmem>>, vector<16x128xf32>
    %8 = vector.shape_cast %5 : vector<16x128xf32> to vector<1x16x128xf32>
    %cst = arith.constant dense<0.000000e+00> : vector<16x128xf32>
    %9 = vector.multi_reduction <add>, %8, %cst [0] : vector<1x16x128xf32> to vector<16x128xf32>
    %10 = arith.addf %7, %9 : vector<16x128xf32>
    %c0_6 = arith.constant 0 : index
    %c0_7 = arith.constant 0 : index
    %11 = vector.load %arg4[%c0_6, %c0_7] : memref<16x128xf32, #tpu.memory_space<vmem>>, vector<16x128xf32>
    tpu.vector_store %arg4[%c0_6, %c0_7], %10 {strides = array<i32>} : memref<16x128xf32, #tpu.memory_space<vmem>>, vector<16x128xf32>,
    %c0_8 = arith.constant 0 : index
    %c0_9 = arith.constant 0 : index
    %12 = vector.load %arg5[%c0_8, %c0_9] : memref<16x128xf32, #tpu.memory_space<vmem>>, vector<16x128xf32>
    %13 = vector.shape_cast %6 : vector<16x128xf32> to vector<1x16x128xf32>
    %cst_10 = arith.constant dense<0.000000e+00> : vector<16x128xf32>
    %14 = vector.multi_reduction <add>, %13, %cst_10 [0] : vector<1x16x128xf32> to vector<16x128xf32>
    %15 = arith.addf %12, %14 : vector<16x128xf32>
    %c0_11 = arith.constant 0 : index
    %c0_12 = arith.constant 0 : index
    %16 = vector.load %arg5[%c0_11, %c0_12] : memref<16x128xf32, #tpu.memory_space<vmem>>, vector<16x128xf32>
    tpu.vector_store %arg5[%c0_11, %c0_12], %15 {strides = array<i32>} : memref<16x128xf32, #tpu.memory_space<vmem>>, vector<16x128xf32>,
    return
  }
  func.func @transform_0(%arg0: i32, %arg1: i32) -> (i32, i32) {
    %c1_i32 = arith.constant 1 : i32
    %0 = arith.muli %arg0, %c1_i32 : i32
    %1 = arith.addi %0, %arg1 : i32
    %c0_i32 = arith.constant 0 : i32
    %c0_i32_0 = arith.constant 0 : i32
    return %1, %c0_i32 : i32, i32
  }
  func.func @transform_1(%arg0: i32, %arg1: i32) -> (i32, i32) {
    %c1_i32 = arith.constant 1 : i32
    %0 = arith.muli %arg0, %c1_i32 : i32
    %1 = arith.addi %0, %arg1 : i32
    %c0_i32 = arith.constant 0 : i32
    %c0_i32_0 = arith.constant 0 : i32
    return %1, %c0_i32 : i32, i32
  }
  func.func @transform_2(%arg0: i32, %arg1: i32) -> (i32, i32) {
    %c0_i32 = arith.constant 0 : i32
    %c0_i32_0 = arith.constant 0 : i32
    return %arg0, %c0_i32 : i32, i32
  }
  func.func @transform_3(%arg0: i32, %arg1: i32) -> (i32, i32) {
    %c0_i32 = arith.constant 0 : i32
    %c0_i32_0 = arith.constant 0 : i32
    return %arg0, %c0_i32 : i32, i32
  }
}

</mosaic_0001>

<llo_original>
// kernel: tpu_custom_call.1
$region0: #{tpu_custom_call.1}
  #allocation0 [shape = 'u32[]', space=smem, size = 0x4, offset = 0x4, fixed_abs, tag = 'smem constant byte address 0x4 - core index']
  #allocation1 [shape = 'u32[72,128]{1,0:T(1,128)}', space=vmem, size = 0x9000, scoped, tag = 'internal scratch']
  %s0 = inlined_call_operand.hbm [shape: f32[16,128], index: 0, kind: input, shape index: {}]
  %s1 = inlined_call_operand.hbm [shape: f32[16,128], index: 1, kind: input, shape index: {}]
  %s2 = inlined_call_operand.hbm [shape: f32[16,128], index: 2, kind: output, shape index: {0}]
  %s3 = inlined_call_operand.hbm [shape: f32[16,128], index: 3, kind: output, shape index: {1}]
  %4 = xla_tuple %s2, %s3
  %s5 = sld [smem:[#allocation0]]
  $region38: #{tpu_custom_call.1} parent=0
    _
  %s7 = ssub.s32 1, %s5
  %s8 = scalar_select 0, %s7, %s5
  $region1: #{tpu_custom_call.1} parent=0
    #allocation2 [shape = 'u8[8192]{0}', space=vmem, size = 0x2000, scoped, tag = 'input window, operand 0, single buffered']
    #allocation3 [shape = 's32[1]{0}', space=sflag, size = 0x4, scoped, tag = 'scoped memory for tpu_custom_call.1']
    #allocation4 [shape = 's32[1]{0}', space=sflag, size = 0x4, scoped, tag = 'scoped memory for tpu_custom_call.1']
    #allocation5 [shape = 'u8[8192]{0}', space=vmem, size = 0x2000, scoped, tag = 'input window, operand 1, single buffered']
    #allocation6 [shape = 's32[1]{0}', space=sflag, size = 0x4, scoped, tag = 'scoped memory for tpu_custom_call.1']
    #allocation7 [shape = 'u8[8192]{0}', space=vmem, size = 0x2000, scoped, tag = 'output window, operand 0, single buffered']
    #allocation8 [shape = 'u8[8192]{0}', space=vmem, size = 0x2000, scoped, tag = 'output window, operand 1, single buffered']
    #allocation9 [shape = 's32[1]{0}', space=sflag, size = 0x4, scoped, tag = 'scoped memory for tpu_custom_call.1']
    %9 = vsyncpa [#allocation3], 0
    %10 = vsyncpa [#allocation6], 0
    %11 = vsyncpa [#allocation4], 0
    %12 = vsyncpa [#allocation9], 0
    // Predicated region
    $region2: #{tpu_custom_call.1} parent=1 // pred_check
      _
    $region3: #{tpu_custom_call.1} parent=1 // pred_check_branch
      %14 = sbr.rel (0) target = $region5
    $region4: #{tpu_custom_call.1} parent=1 // pred_region
      %s15 = sadd.s32 0, 0
      %s16 = smul.u32 2, %s15
      %18 = vsyncadd [#allocation3], 0
      %s19 = smul.addr %s16, 8
      %s20 = scalar_lea.hbm %s0, %s19
      %s21 = sshll.u32 %s20, 4
      %s22 = int_to_ptr.hbm [resolvable:$true] %s21
      %s23 = sshll.u32 [#allocation2], 4
      %s24 = int_to_ptr.vmem [resolvable:$true] %s23
      %29 = dma.hbm_to_vmem [thread:$0]  %s22, 256, %s24, [#allocation3], 128, 128, 8
    $region5: #{tpu_custom_call.1} parent=1 // pred_fallthru
      _
    // Predicated region
    $region6: #{tpu_custom_call.1} parent=1 // pred_check
      _
    $region7: #{tpu_custom_call.1} parent=1 // pred_check_branch
      %31 = sbr.rel (0) target = $region9
    $region8: #{tpu_custom_call.1} parent=1 // pred_region
      %s32 = sadd.s32 0, 0
      %s33 = smul.u32 2, %s32
      %35 = vsyncadd [#allocation6], 0
      %s36 = smul.addr %s33, 8
      %s37 = scalar_lea.hbm %s1, %s36
      %s38 = sshll.u32 %s37, 4
      %s39 = int_to_ptr.hbm [resolvable:$true] %s38
      %s40 = sshll.u32 [#allocation5], 4
      %s41 = int_to_ptr.vmem [resolvable:$true] %s40
      %46 = dma.hbm_to_vmem [thread:$0]  %s39, 256, %s41, [#allocation6], 128, 128, 8
    $region9: #{tpu_custom_call.1} parent=1 // pred_fallthru
      _
    // Predicated region
    $region10: #{tpu_custom_call.1} parent=1 // pred_check
      _
    $region11: #{tpu_custom_call.1} parent=1 // pred_check_branch
      %48 = sbr.rel (0) target = $region13
    $region12: #{tpu_custom_call.1} parent=1 // pred_region
      %50 = dma.done [#allocation3], 256
    $region13: #{tpu_custom_call.1} parent=1 // pred_fallthru
      _
    // Predicated region
    $region14: #{tpu_custom_call.1} parent=1 // pred_check
      _
    $region15: #{tpu_custom_call.1} parent=1 // pred_check_branch
      %52 = sbr.rel (0) target = $region17
    $region16: #{tpu_custom_call.1} parent=1 // pred_region
      %54 = dma.done [#allocation6], 256
    $region17: #{tpu_custom_call.1} parent=1 // pred_fallthru
      _
    %s55 = sadd.s32 0, 0
    %s56 = smul.u32 2, %s55
    %s57 = sadd.s32 0, 0
    %s58 = smul.u32 2, %s57
    %p59 = scmp.eq.s32.totalorder 0, 0
    // Predicated region
    $region18: #{tpu_custom_call.1} parent=1 // pred_check
      %p60 = pneg %p59
    $region19: #{tpu_custom_call.1} parent=1 // pred_check_branch
      %62 = sbr.rel (%p60) target = $region21
    $region20: #{tpu_custom_call.1} parent=1 // pred_region
      %63 = vst [vmem:[#allocation7] sm:$0xff] 0.0
      %64 = vst [vmem:[#allocation7 + $0x8] sm:$0xff] 0.0
      %65 = vst [vmem:[#allocation8] sm:$0xff] 0.0
      %66 = vst [vmem:[#allocation8 + $0x8] sm:$0xff] 0.0
    $region21: #{tpu_custom_call.1} parent=1 // pred_fallthru
      _
    %v67 = vld [vmem:[#allocation2] sm:$0xff]
    %v68 = vld [vmem:[#allocation2 + $0x8] sm:$0xff]
    %v69 = vld [vmem:[#allocation5] sm:$0xff]
    %v70 = vld [vmem:[#allocation5 + $0x8] sm:$0xff]
    %v71 = vmul.f32 %v67, %v69
    %v72 = vmul.f32 %v68, %v70
    %v73 = vadd.f32 %v67, %v69
    %v74 = vadd.f32 %v68, %v70
    %v75 = vld [vmem:[#allocation7] sm:$0xff]
    %v76 = vld [vmem:[#allocation7 + $0x8] sm:$0xff]
    %v77 = vadd.f32 %v71, 0.0
    %v78 = vadd.f32 %v72, 0.0
    %v79 = vadd.f32 %v75, %v77
    %v80 = vadd.f32 %v76, %v78
    %81 = vst [vmem:[#allocation7] sm:$0xff] %v79
    %82 = vst [vmem:[#allocation7 + $0x8] sm:$0xff] %v80
    %v83 = vld [vmem:[#allocation8] sm:$0xff]
    %v84 = vld [vmem:[#allocation8 + $0x8] sm:$0xff]
    %v85 = vadd.f32 %v73, 0.0
    %v86 = vadd.f32 %v74, 0.0
    %v87 = vadd.f32 %v83, %v85
    %v88 = vadd.f32 %v84, %v86
    %89 = vst [vmem:[#allocation8] sm:$0xff] %v87
    %90 = vst [vmem:[#allocation8 + $0x8] sm:$0xff] %v88
    // Predicated region
    $region22: #{tpu_custom_call.1} parent=1 // pred_check
      _
    $region23: #{tpu_custom_call.1} parent=1 // pred_check_branch
      %92 = sbr.rel (0) target = $region25
    $region24: #{tpu_custom_call.1} parent=1 // pred_region
      %94 = vsyncadd [#allocation4], 0
      %s95 = sshll.u32 [#allocation7], 4
      %s96 = int_to_ptr.vmem [resolvable:$true] %s95
      %s97 = sshll.u32 %s2, 4
      %s98 = int_to_ptr.hbm [resolvable:$true] %s97
      %103 = dma.vmem_to_hbm [thread:$0]  %s96, 256, %s98, [#allocation4], 128, 128, 8
    $region25: #{tpu_custom_call.1} parent=1 // pred_fallthru
      _
    // Predicated region
    $region26: #{tpu_custom_call.1} parent=1 // pred_check
      _
    $region27: #{tpu_custom_call.1} parent=1 // pred_check_branch
      %105 = sbr.rel (0) target = $region29
    $region28: #{tpu_custom_call.1} parent=1 // pred_region
      %107 = vsyncadd [#allocation9], 0
      %s108 = sshll.u32 [#allocation8], 4
      %s109 = int_to_ptr.vmem [resolvable:$true] %s108
      %s110 = sshll.u32 %s3, 4
      %s111 = int_to_ptr.hbm [resolvable:$true] %s110
      %116 = dma.vmem_to_hbm [thread:$0]  %s109, 256, %s111, [#allocation9], 128, 128, 8
    $region29: #{tpu_custom_call.1} parent=1 // pred_fallthru
      _
    // Predicated region
    $region30: #{tpu_custom_call.1} parent=1 // pred_check
      _
    $region31: #{tpu_custom_call.1} parent=1 // pred_check_branch
      %118 = sbr.rel (0) target = $region33
    $region32: #{tpu_custom_call.1} parent=1 // pred_region
      %120 = dma.done [#allocation4], 256
    $region33: #{tpu_custom_call.1} parent=1 // pred_fallthru
      _
    // Predicated region
    $region34: #{tpu_custom_call.1} parent=1 // pred_check
      _
    $region35: #{tpu_custom_call.1} parent=1 // pred_check_branch
      %122 = sbr.rel (0) target = $region37
    $region36: #{tpu_custom_call.1} parent=1 // pred_region
      %124 = dma.done [#allocation9], 256
    $region37: #{tpu_custom_call.1} parent=1 // pred_fallthru
      _
    %125 = vsyncpa [#allocation3], 1
    %126 = vsyncpa [#allocation6], 1
    %127 = vsyncpa [#allocation4], 1
    %128 = vsyncpa [#allocation9], 1

</llo_original>
